<compile_context>
chip_gen: v6e
topology: v6e:2x2x1
jax: 0.10.0
libtpu: 0.0.40
codegen_flags: <defaults>
</compile_context>

<pallas_src>
import functools

import jax
import jax.numpy as jnp
from jax.experimental import pallas as pl
from jax.experimental.pallas import tpu as pltpu


# ----------------------------- hardware config ------------------------------
def _tpu_config():
    """Per-generation VMEM budget & tile targets (conservative fallback)."""
    vmem_cap = None
    try:
        vmem_cap = int(pltpu.get_tpu_info().vmem_capacity_bytes)
    except Exception:
        vmem_cap = None
    if vmem_cap is not None and vmem_cap > 100 * 1024 * 1024:
        # v5e / v6e class: 128 MiB VMEM, single TensorCore per chip.
        return {"vmem_limit": 96 * 1024 * 1024, "row_target": 512,
                "split_batch": False}
    # v7x class (64 MiB / TC, 2 TCs per chip) or unknown: stay conservative.
    return {"vmem_limit": 48 * 1024 * 1024, "row_target": 256,
            "split_batch": True}


# ----------------------------- helpers --------------------------------------
def _largest_divisor_leq(n, cap):
    cap = int(max(1, min(n, cap)))
    for d in range(cap, 0, -1):
        if n % d == 0:
            return d
    return 1


def _gelu_exact(x):
    # nn.GELU() default is the exact erf formulation.
    return 0.5 * x * (1.0 + jax.lax.erf(x * (1.0 / jnp.sqrt(2.0))))


def _layernorm(z, gamma, beta, eps=1e-5):
    mu = jnp.mean(z, axis=-1, keepdims=True)
    var = jnp.mean((z - mu) ** 2, axis=-1, keepdims=True)
    return (z - mu) * jax.lax.rsqrt(var + eps) * gamma + beta


def _buffered_spec(block_shape, index_map, buffer_count=1):
    """Constant-index weight block: fetched once, kept in a single buffer."""
    try:
        return pl.BlockSpec(block_shape, index_map,
                            pipeline_mode=pl.Buffered(buffer_count))
    except Exception:   # older JAX without pipeline_mode support
        return pl.BlockSpec(block_shape, index_map)


def _pick_row_tile(n, D, H, gate_bytes, w_bytes, vmem_limit, row_target):
    budget = int(vmem_limit * 0.75)
    weights = (D * D + 2 * D * 4 * H) * w_bytes          # single-buffered
    # double-buffered x rows + double-buffered gate rows (both dirs)
    # + slack for in-flight f32 intermediates (z, pre-cast gates).
    per_row = 2 * D * 4 + 2 * 2 * 4 * H * gate_bytes + 3 * 4 * H * 4
    cap = max(8, (budget - weights) // max(1, per_row))
    return _largest_divisor_leq(n, min(row_target, cap))


def _pick_lstm_tiles(B, T, H, gate_bytes, vmem_limit, split_batch):
    budget = int(vmem_limit * 0.75)
    whh_bytes = 2 * (H * 4 * H) * 4                      # both dirs, f32, 1 buf
    cands = []
    if split_batch and B % 16 == 0:
        cands.append(B // 2)                             # 2 parallel steps (v7x)
    cands.append(B)
    d = B // 2
    while d >= 8:
        if B % d == 0 and d % 8 == 0 and d not in cands:
            cands.append(d)
        d //= 2
    for bt in cands:
        fixed = whh_bytes + 4 * bt * H * 4               # weights + h/c scratch
        # per time step: 2 dirs x 2 buffers of gates in + 2 dirs x 2 buffers out
        per_step = bt * (2 * 2 * 4 * H * gate_bytes + 2 * 2 * H * 4)
        avail = budget - fixed
        if avail < per_step:
            continue
        tc = min(T, max(1, avail // per_step))
        return bt, _largest_divisor_leq(T, tc)
    return cands[-1], 1


# -------- kernel 1: fused fc1 + GELU + LN + LSTM input projection -----------
def _fc1_gates_kernel(x_ref, w1_ref, g1_ref, b1_ref,
                      wihf_ref, wihb_ref, bf_ref, bb_ref,
                      gf_ref, gb_ref, *, compute_dtype):
    x = x_ref[...].astype(compute_dtype)
    z = jnp.dot(x, w1_ref[...], preferred_element_type=jnp.float32)
    z = _gelu_exact(z)
    z = _layernorm(z, g1_ref[...], b1_ref[...])
    zc = z.astype(compute_dtype)
    # Hoisted LSTM input projection (both directions), bias = b_ih + b_hh.
    gf = jnp.dot(zc, wihf_ref[...], preferred_element_type=jnp.float32) + bf_ref[...]
    gb = jnp.dot(zc, wihb_ref[...], preferred_element_type=jnp.float32) + bb_ref[...]
    gf_ref[...] = gf.astype(gf_ref.dtype)
    gb_ref[...] = gb.astype(gb_ref.dtype)


def _fc1_gates_call(x2d, w1, g1, b1, wihf, wihb, bf, bb, *,
                    tile_m, compute_dtype, gate_dtype, vmem_limit):
    n, D = x2d.shape
    G = wihf.shape[1]
    row = lambda i: (i, 0)
    const = lambda i: (0, 0)
    kern = functools.partial(_fc1_gates_kernel, compute_dtype=compute_dtype)
    return pl.pallas_call(
        kern,
        out_shape=(jax.ShapeDtypeStruct((n, G), gate_dtype),
                   jax.ShapeDtypeStruct((n, G), gate_dtype)),
        grid=(n // tile_m,),
        in_specs=[
            pl.BlockSpec((tile_m, D), row),
            _buffered_spec((D, D), const),      # w1      (fetched once)
            pl.BlockSpec((1, D), const),
            pl.BlockSpec((1, D), const),
            _buffered_spec((D, G), const),      # wih_f   (fetched once)
            _buffered_spec((D, G), const),      # wih_b   (fetched once)
            pl.BlockSpec((1, G), const),
            pl.BlockSpec((1, G), const),
        ],
        out_specs=(pl.BlockSpec((tile_m, G), row),
                   pl.BlockSpec((tile_m, G), row)),
        compiler_params=pltpu.CompilerParams(
            dimension_semantics=("parallel",),
            vmem_limit_bytes=vmem_limit),
    )(x2d, w1, g1, b1, wihf, wihb, bf, bb)


# ------------------- kernel 2: bidirectional LSTM recurrence ----------------
def _bilstm_kernel(gf_ref, gb_ref, whh_f_ref, whh_b_ref,
                   out_f_ref, out_b_ref,
                   hf_sc, cf_sc, hb_sc, cb_sc, *, unroll):
    tc = gf_ref.shape[0]                # time steps in this chunk
    H = out_f_ref.shape[2]

    # New batch chunk starts with h = c = 0 (inner time axis restarts at 0).
    @pl.when(pl.program_id(1) == 0)
    def _():
        hf_sc[...] = jnp.zeros_like(hf_sc)
        cf_sc[...] = jnp.zeros_like(cf_sc)
        hb_sc[...] = jnp.zeros_like(hb_sc)
        cb_sc[...] = jnp.zeros_like(cb_sc)

    whh_f = whh_f_ref[...]
    whh_b = whh_b_ref[...]

    def cell(gx, h, c, whh):
        # Only the recurrent matmul remains on the serial path (f32 state).
        gates = gx.astype(jnp.float32) + jnp.dot(
            h.astype(whh.dtype), whh, preferred_element_type=jnp.float32)
        i_g = jax.nn.sigmoid(gates[:, 0 * H:1 * H])
        f_g = jax.nn.sigmoid(gates[:, 1 * H:2 * H])
        g_g = jnp.tanh(gates[:, 2 * H:3 * H])
        o_g = jax.nn.sigmoid(gates[:, 3 * H:4 * H])
        c_new = f_g * c + i_g * g_g
        h_new = o_g * jnp.tanh(c_new)
        return h_new, c_new

    def body(j, carry):
        h_f, c_f, h_b, c_b = carry
        jb = tc - 1 - j                                     # reversed local time
        h_f, c_f = cell(gf_ref[j], h_f, c_f, whh_f)         # forward direction
        h_b, c_b = cell(gb_ref[jb], h_b, c_b, whh_b)        # backward direction
        out_f_ref[j] = h_f
        out_b_ref[jb] = h_b
        return (h_f, c_f, h_b, c_b)

    carry0 = (hf_sc[...], cf_sc[...], hb_sc[...], cb_sc[...])
    h_f, c_f, h_b, c_b = jax.lax.fori_loop(0, tc, body, carry0, unroll=unroll)
    hf_sc[...] = h_f
    cf_sc[...] = c_f
    hb_sc[...] = h_b
    cb_sc[...] = c_b


def bilstm(gf, gb, whh_f, whh_b, *, b_tile, t_chunk, vmem_limit):
    T, B, G = gf.shape
    H = whh_f.shape[0]
    nb = B // b_tile
    nt = T // t_chunk
    # Keep unroll=2 only when the live set stays within vregs (no spills).
    unroll = 2 if (b_tile * H) <= 4096 else 1
    kern = functools.partial(_bilstm_kernel, unroll=unroll)
    const = lambda b, t: (0, 0)
    return pl.pallas_call(
        kern,
        out_shape=(jax.ShapeDtypeStruct((T, B, H), jnp.float32),
                   jax.ShapeDtypeStruct((T, B, H), jnp.float32)),
        grid=(nb, nt),
        in_specs=[
            # forward gates: chunk t; backward gates: chunk nt-1-t (streamed).
            pl.BlockSpec((t_chunk, b_tile, G), lambda b, t: (t, b, 0)),
            pl.BlockSpec((t_chunk, b_tile, G), lambda b, t: (nt - 1 - t, b, 0)),
            _buffered_spec((H, G), const),      # whh_f (fetched once)
            _buffered_spec((H, G), const),      # whh_b (fetched once)
        ],
        out_specs=(
            pl.BlockSpec((t_chunk, b_tile, H), lambda b, t: (t, b, 0)),
            pl.BlockSpec((t_chunk, b_tile, H), lambda b, t: (nt - 1 - t, b, 0)),
        ),
        scratch_shapes=[pltpu.VMEM((b_tile, H), jnp.float32)] * 4,
        compiler_params=pltpu.CompilerParams(
            dimension_semantics=("parallel", "arbitrary"),
            vmem_limit_bytes=vmem_limit),
    )(gf, gb, whh_f, whh_b)


# -------- kernel 3: fused split-fc2 + GELU + LN (+ residual) -----------------
def _fc2_ln_res_kernel(hf_ref, hb_ref, w2a_ref, w2b_ref, g2_ref, b2_ref,
                       x_ref, o_ref, *, compute_dtype):
    z = (jnp.dot(hf_ref[...].astype(compute_dtype), w2a_ref[...],
                 preferred_element_type=jnp.float32)
         + jnp.dot(hb_ref[...].astype(compute_dtype), w2b_ref[...],
                   preferred_element_type=jnp.float32))
    z = _gelu_exact(z)
    o_ref[...] = (_layernorm(z, g2_ref[...], b2_ref[...])
                  + x_ref[...]).astype(o_ref.dtype)


def _fc2_ln_kernel(hf_ref, hb_ref, w2a_ref, w2b_ref, g2_ref, b2_ref,
                   o_ref, *, compute_dtype):
    z = (jnp.dot(hf_ref[...].astype(compute_dtype), w2a_ref[...],
                 preferred_element_type=jnp.float32)
         + jnp.dot(hb_ref[...].astype(compute_dtype), w2b_ref[...],
                   preferred_element_type=jnp.float32))
    z = _gelu_exact(z)
    o_ref[...] = _layernorm(z, g2_ref[...], b2_ref[...]).astype(o_ref.dtype)


def _fc2_call(hf2d, hb2d, w2a, w2b, g2, b2, residual, *,
              tile_m, compute_dtype, vmem_limit):
    n, H = hf2d.shape
    D = w2a.shape[1]
    row = lambda i: (i, 0)
    const = lambda i: (0, 0)
    in_specs = [
        pl.BlockSpec((tile_m, H), row),
        pl.BlockSpec((tile_m, H), row),
        _buffered_spec((H, D), const),          # w2[:H]  (fetched once)
        _buffered_spec((H, D), const),          # w2[H:]  (fetched once)
        pl.BlockSpec((1, D), const),
        pl.BlockSpec((1, D), const),
    ]
    args = [hf2d, hb2d, w2a, w2b, g2, b2]
    if residual is not None:
        in_specs.append(pl.BlockSpec((tile_m, D), row))
        args.append(residual)
        kern = functools.partial(_fc2_ln_res_kernel, compute_dtype=compute_dtype)
    else:
        kern = functools.partial(_fc2_ln_kernel, compute_dtype=compute_dtype)
    return pl.pallas_call(
        kern,
        out_shape=jax.ShapeDtypeStruct((n, D), jnp.float32),
        grid=(n // tile_m,),
        in_specs=in_specs,
        out_specs=pl.BlockSpec((tile_m, D), row),
        compiler_params=pltpu.CompilerParams(
            dimension_semantics=("parallel",),
            vmem_limit_bytes=vmem_limit),
    )(*args)


# ----------------------------- full module -----------------------------------
def mlp_lstm_block(x, params, add_residual=True, use_bf16_matmul=True,
                   recurrent_weights_bf16=False, row_tile=None, lstm_tiles=None):
    B, T, D = x.shape
    H = params["whh_f"].shape[0]
    cfg = _tpu_config()
    cdt = jnp.bfloat16 if use_bf16_matmul else jnp.float32
    gate_dtype = jnp.bfloat16 if use_bf16_matmul else jnp.float32
    rdt = jnp.bfloat16 if recurrent_weights_bf16 else jnp.float32

    # Weight prep (one-time casts; bf16 halves weight DMA / VMEM).
    w1 = params["w1"].astype(cdt)
    wih_f = params["wih_f"].astype(cdt)
    wih_b = params["wih_b"].astype(cdt)
    w2a = params["w2"][:H].astype(cdt)      # forward half of fc2
    w2b = params["w2"][H:].astype(cdt)      # backward half of fc2
    whh_f = params["whh_f"].astype(rdt)     # spec: f32 recurrence (default)
    whh_b = params["whh_b"].astype(rdt)
    ln1_g = params["ln1_g"].reshape(1, D).astype(jnp.float32)
    ln1_b = params["ln1_b"].reshape(1, D).astype(jnp.float32)
    ln2_g = params["ln2_g"].reshape(1, D).astype(jnp.float32)
    ln2_b = params["ln2_b"].reshape(1, D).astype(jnp.float32)
    b_f = params["b_f"].reshape(1, 4 * H).astype(jnp.float32)
    b_b = params["b_b"].reshape(1, 4 * H).astype(jnp.float32)

    # Time-major flatten: the only layout ops outside the kernels touch the
    # D-wide x / out tensors; everything in between is a free bitcast reshape.
    n = B * T
    x_tm = jnp.transpose(x.astype(jnp.float32), (1, 0, 2))      # (T, B, D)
    x2d = x_tm.reshape(n, D)

    gate_bytes = 2 if use_bf16_matmul else 4
    w_bytes = 2 if use_bf16_matmul else 4
    tile_m = row_tile if row_tile is not None else _pick_row_tile(
        n, D, H, gate_bytes, w_bytes, cfg["vmem_limit"], cfg["row_target"])
    if lstm_tiles is not None:
        b_tile, t_chunk = lstm_tiles
    else:
        b_tile, t_chunk = _pick_lstm_tiles(
            B, T, H, gate_bytes, cfg["vmem_limit"], cfg["split_batch"])
    assert n % tile_m == 0 and B % b_tile == 0 and T % t_chunk == 0

    # Kernel 1: fc1 + GELU + LN + hoisted LSTM input projection (both dirs),
    # written directly in time-major row order.
    gf2d, gb2d = _fc1_gates_call(
        x2d, w1, ln1_g, ln1_b, wih_f, wih_b, b_f, b_b,
        tile_m=tile_m, compute_dtype=cdt, gate_dtype=gate_dtype,
        vmem_limit=cfg["vmem_limit"])
    gf = gf2d.reshape(T, B, 4 * H)          # free (leading-dim split)
    gb = gb2d.reshape(T, B, 4 * H)

    # Kernel 2: f32 recurrence, gates/outputs streamed in time chunks.
    # lstm.flatten_parameters() is a CUDA weight-layout hint: no-op here.
    out_f, out_b = bilstm(gf, gb, whh_f, whh_b, b_tile=b_tile,
                          t_chunk=t_chunk, vmem_limit=cfg["vmem_limit"])
    hf2d = out_f.reshape(n, H)              # free (leading-dim merge)
    hb2d = out_b.reshape(n, H)

    # Kernel 3: split fc2 (no concat round trip) + GELU + LN (+ residual).
    out2d = _fc2_call(hf2d, hb2d, w2a, w2b, ln2_g, ln2_b,
                      x2d if add_residual else None,
                      tile_m=tile_m, compute_dtype=cdt,
                      vmem_limit=cfg["vmem_limit"])
    return jnp.transpose(out2d.reshape(T, B, D), (1, 0, 2))


# ----------------------------- pure-JAX reference -----------------------------
def reference_forward(x, params, add_residual=True, use_bf16_matmul=False):
    cdt = jnp.bfloat16 if use_bf16_matmul else jnp.float32

    def mm(a, b):
        return jnp.dot(a.astype(cdt), b.astype(cdt),
                       preferred_element_type=jnp.float32)

    H = params["whh_f"].shape[0]

    z = _layernorm(_gelu_exact(mm(x, params["w1"])),
                   params["ln1_g"], params["ln1_b"])
    z_tbd = jnp.transpose(z, (1, 0, 2))

    def run_dir(gx_seq, whh):
        B = gx_seq.shape[1]

        def step(carry, gx_t):
            h, c = carry
            gates = gx_t + h @ whh
            i_g = jax.nn.sigmoid(gates[:, :H])
            f_g = jax.nn.sigmoid(gates[:, H:2 * H])
            g_g = jnp.tanh(gates[:, 2 * H:3 * H])
            o_g = jax.nn.sigmoid(gates[:, 3 * H:])
            c = f_g * c + i_g * g_g
            h = o_g * jnp.tanh(c)
            return (h, c), h

        init = (jnp.zeros((B, H), jnp.float32), jnp.zeros((B, H), jnp.float32))
        _, hs = jax.lax.scan(step, init, gx_seq)
        return hs

    # Match the kernel's gate-storage rounding (bf16 path stores gates bf16).
    gx_f = (mm(z_tbd, params["wih_f"]) + params["b_f"]).astype(cdt).astype(jnp.float32)
    gx_b = (mm(z_tbd, params["wih_b"]) + params["b_b"]).astype(cdt).astype(jnp.float32)
    hf = run_dir(gx_f, params["whh_f"])
    hb = run_dir(gx_b[::-1], params["whh_b"])[::-1]
    h = jnp.transpose(jnp.concatenate([hf, hb], axis=-1), (1, 0, 2))
    out = _layernorm(_gelu_exact(mm(h, params["w2"])),
                     params["ln2_g"], params["ln2_b"])
    if add_residual:
        out = out + x
    return out


# ----------------------------- params ----------------------------------------
def init_params(key, dim):
    ks = jax.random.split(key, 12)
    s = 1.0 / float(jnp.sqrt(dim))

    def u(k, shape, scale):
        return jax.random.uniform(k, shape, jnp.float32, -scale, scale)

    return {
        # fc1: stored as (in, out) == W_pt.T
        "w1": u(ks[0], (dim, dim), s),
        "ln1_g": 1.0 + 0.1 * jax.random.normal(ks[1], (dim,), jnp.float32),
        "ln1_b": 0.1 * jax.random.normal(ks[2], (dim,), jnp.float32),
        # LSTM (gate order i,f,g,o); bias = b_ih + b_hh combined
        "wih_f": u(ks[3], (dim, 4 * dim), s),
        "whh_f": u(ks[4], (dim, 4 * dim), s),
        "b_f": u(ks[5], (1, 4 * dim), s),
        "wih_b": u(ks[6], (dim, 4 * dim), s),
        "whh_b": u(ks[7], (dim, 4 * dim), s),
        "b_b": u(ks[8], (1, 4 * dim), s),
        # fc2: (2*dim, dim)
        "w2": u(ks[9], (2 * dim, dim), 1.0 / float(jnp.sqrt(2.0 * dim))),
        "ln2_g": 1.0 + 0.1 * jax.random.normal(ks[10], (dim,), jnp.float32),
        "ln2_b": 0.1 * jax.random.normal(ks[11], (dim,), jnp.float32),
    }


if __name__ == "__main__":
    B, T, D = 2, 8, 32
    key = jax.random.PRNGKey(0)
    k_x, k_p = jax.random.split(key)
    x = jax.random.normal(k_x, (B, T, D), jnp.float32)
    params = init_params(k_p, D)

    # 1) Strict check: pure f32 path vs. f32 reference (matches PyTorch math).
    out_f32 = jax.block_until_ready(
        mlp_lstm_block(x, params, add_residual=True, use_bf16_matmul=False))
    ref_f32 = jax.block_until_ready(
        reference_forward(x, params, add_residual=True, use_bf16_matmul=False))
    err_f32 = float(jnp.max(jnp.abs(out_f32 - ref_f32)))

    # 2) Performance path: bf16 MXU operands + bf16 gate storage (f32 accum,
    #    f32 LN/GELU/LSTM state) vs. a precision-matched JAX reference.
    out_bf = jax.block_until_ready(
        mlp_lstm_block(x, params, add_residual=True, use_bf16_matmul=True))
    ref_bf = jax.block_until_ready(
        reference_forward(x, params, add_residual=True, use_bf16_matmul=True))
    err_bf = float(jnp.max(jnp.abs(out_bf - ref_bf)))

    # 3) Multi-chunk check: forces multiple batch chunks, time chunks and row
    #    tiles so the streamed recurrence / reverse-chunk indexing is exercised.
    B3, T3, D3 = 16, 6, 32
    k_x3, k_p3 = jax.random.split(jax.random.PRNGKey(1))
    x3 = jax.random.normal(k_x3, (B3, T3, D3), jnp.float32)
    params3 = init_params(k_p3, D3)
    out_c = jax.block_until_ready(
        mlp_lstm_block(x3, params3, add_residual=True, use_bf16_matmul=False,
                       row_tile=16, lstm_tiles=(8, 2)))
    ref_c = jax.block_until_ready(
        reference_forward(x3, params3, add_residual=True, use_bf16_matmul=False))
    err_c = float(jnp.max(jnp.abs(out_c - ref_c)))

    ok = (out_f32.shape == (B, T, D) and err_f32 < 5e-3
          and err_bf < 5e-3 and err_c < 5e-3)
    if not ok:
        raise AssertionError(
            f"mismatch vs reference: f32 err={err_f32}, bf16 err={err_bf}, "
            f"chunked err={err_c}")
    print("KERNEL_OK")
</pallas_src>

<mosaic_0001>
module attributes {stable_mosaic.version = 11 : i64} {
  func.func @_fc1_gates_kernel(%arg0: i32, %arg1: memref<16x32xf32, #tpu.memory_space<vmem>>, %arg2: memref<32x32xf32, #tpu.memory_space<vmem>>, %arg3: memref<1x32xf32, #tpu.memory_space<vmem>>, %arg4: memref<1x32xf32, #tpu.memory_space<vmem>>, %arg5: memref<32x128xf32, #tpu.memory_space<vmem>>, %arg6: memref<32x128xf32, #tpu.memory_space<vmem>>, %arg7: memref<1x128xf32, #tpu.memory_space<vmem>>, %arg8: memref<1x128xf32, #tpu.memory_space<vmem>>, %arg9: memref<16x128xf32, #tpu.memory_space<vmem>>, %arg10: memref<16x128xf32, #tpu.memory_space<vmem>>) attributes {dimension_semantics = [#tpu.dimension_semantics<parallel>], iteration_bounds = array<i64: 1>, scalar_prefetch = 0 : i64, scratch_operands = 0 : i64, tpu.core_type = #tpu.core_type<tc>, window_params = [{transform_indices = @transform_0, window_bounds = array<i64: 16, 32>}, {pipeline_mode = #tpu.pipeline_mode<synchronous>, transform_indices = @transform_1, window_bounds = array<i64: 32, 32>}, {pipeline_mode = #tpu.pipeline_mode<synchronous>, transform_indices = @transform_2, window_bounds = array<i64: 1, 32>}, {pipeline_mode = #tpu.pipeline_mode<synchronous>, transform_indices = @transform_3, window_bounds = array<i64: 1, 32>}, {pipeline_mode = #tpu.pipeline_mode<synchronous>, transform_indices = @transform_4, window_bounds = array<i64: 32, 128>}, {pipeline_mode = #tpu.pipeline_mode<synchronous>, transform_indices = @transform_5, window_bounds = array<i64: 32, 128>}, {pipeline_mode = #tpu.pipeline_mode<synchronous>, transform_indices = @transform_6, window_bounds = array<i64: 1, 128>}, {pipeline_mode = #tpu.pipeline_mode<synchronous>, transform_indices = @transform_7, window_bounds = array<i64: 1, 128>}, {transform_indices = @transform_8, window_bounds = array<i64: 16, 128>}, {transform_indices = @transform_9, window_bounds = array<i64: 16, 128>}]} {
    %c0 = arith.constant 0 : index
    %c0_0 = arith.constant 0 : index
    %0 = vector.load %arg1[%c0, %c0_0] : memref<16x32xf32, #tpu.memory_space<vmem>>, vector<16x32xf32>
    %c0_1 = arith.constant 0 : index
    %c0_2 = arith.constant 0 : index
    %1 = vector.load %arg2[%c0_1, %c0_2] : memref<32x32xf32, #tpu.memory_space<vmem>>, vector<32x32xf32>
    %cst = arith.constant dense<0.000000e+00> : vector<16x32xf32>
    %2 = tpu.matmul %0, %1, %cst {dimension_numbers = #tpu.dot_dimension_numbers<[1], [0], [0], [1], [0, 0, 1, 1], [], []>} : vector<16x32xf32>, vector<32x32xf32>, vector<16x32xf32> -> vector<16x32xf32>
    %cst_3 = arith.constant 5.000000e-01 : f32
    %3 = vector.broadcast %cst_3 : f32 to vector<16x32xf32>
    %4 = arith.mulf %3, %2 : vector<16x32xf32>
    %cst_4 = arith.constant 2.000000e+00 : f32
    %5 = math.sqrt %cst_4 : f32
    %cst_5 = arith.constant 1.000000e+00 : f32
    %6 = arith.divf %cst_5, %5 : f32
    %7 = vector.broadcast %6 : f32 to vector<16x32xf32>
    %8 = arith.mulf %2, %7 : vector<16x32xf32>
    %9 = math.erf %8 : vector<16x32xf32>
    %cst_6 = arith.constant 1.000000e+00 : f32
    %10 = vector.broadcast %cst_6 : f32 to vector<16x32xf32>
    %11 = arith.addf %10, %9 : vector<16x32xf32>
    %12 = arith.mulf %4, %11 : vector<16x32xf32>
    %c0_7 = arith.constant 0 : index
    %c0_8 = arith.constant 0 : index
    %13 = vector.load %arg3[%c0_7, %c0_8] : memref<1x32xf32, #tpu.memory_space<vmem>>, vector<1x32xf32>
    %c0_9 = arith.constant 0 : index
    %c0_10 = arith.constant 0 : index
    %14 = vector.load %arg4[%c0_9, %c0_10] : memref<1x32xf32, #tpu.memory_space<vmem>>, vector<1x32xf32>
    %cst_11 = arith.constant dense<0.000000e+00> : vector<16xf32>
    %15 = vector.multi_reduction <add>, %12, %cst_11 [1] : vector<16x32xf32> to vector<16xf32>
    %16 = vector.shape_cast %15 : vector<16xf32> to vector<16x1xf32>
    %cst_12 = arith.constant 3.200000e+01 : f32
    %17 = vector.broadcast %cst_12 : f32 to vector<16x1xf32>
    %18 = arith.divf %16, %17 : vector<16x1xf32>
    %19 = vector.broadcast %18 : vector<16x1xf32> to vector<16x32xf32>
    %20 = arith.subf %12, %19 : vector<16x32xf32>
    %21 = arith.mulf %20, %20 : vector<16x32xf32>
    %cst_13 = arith.constant dense<0.000000e+00> : vector<16xf32>
    %22 = vector.multi_reduction <add>, %21, %cst_13 [1] : vector<16x32xf32> to vector<16xf32>
    %23 = vector.shape_cast %22 : vector<16xf32> to vector<16x1xf32>
    %cst_14 = arith.constant 3.200000e+01 : f32
    %24 = vector.broadcast %cst_14 : f32 to vector<16x1xf32>
    %25 = arith.divf %23, %24 : vector<16x1xf32>
    %26 = vector.broadcast %18 : vector<16x1xf32> to vector<16x32xf32>
    %27 = arith.subf %12, %26 : vector<16x32xf32>
    %cst_15 = arith.constant 9.99999974E-6 : f32
    %28 = vector.broadcast %cst_15 : f32 to vector<16x1xf32>
    %29 = arith.addf %25, %28 : vector<16x1xf32>
    %30 = math.rsqrt %29 : vector<16x1xf32>
    %31 = vector.broadcast %30 : vector<16x1xf32> to vector<16x32xf32>
    %32 = arith.mulf %27, %31 : vector<16x32xf32>
    %33 = vector.broadcast %13 : vector<1x32xf32> to vector<16x32xf32>
    %34 = arith.mulf %32, %33 : vector<16x32xf32>
    %35 = vector.broadcast %14 : vector<1x32xf32> to vector<16x32xf32>
    %36 = arith.addf %34, %35 : vector<16x32xf32>
    %c0_16 = arith.constant 0 : index
    %c0_17 = arith.constant 0 : index
    %37 = vector.load %arg5[%c0_16, %c0_17] : memref<32x128xf32, #tpu.memory_space<vmem>>, vector<32x128xf32>
    %cst_18 = arith.constant dense<0.000000e+00> : vector<16x128xf32>
    %38 = tpu.matmul %36, %37, %cst_18 {dimension_numbers = #tpu.dot_dimension_numbers<[1], [0], [0], [1], [0, 0, 1, 1], [], []>} : vector<16x32xf32>, vector<32x128xf32>, vector<16x128xf32> -> vector<16x128xf32>
    %c0_19 = arith.constant 0 : index
    %c0_20 = arith.constant 0 : index
    %39 = vector.load %arg7[%c0_19, %c0_20] : memref<1x128xf32, #tpu.memory_space<vmem>>, vector<1x128xf32>
    %40 = vector.broadcast %39 : vector<1x128xf32> to vector<16x128xf32>
    %41 = arith.addf %38, %40 : vector<16x128xf32>
    %c0_21 = arith.constant 0 : index
    %c0_22 = arith.constant 0 : index
    %42 = vector.load %arg6[%c0_21, %c0_22] : memref<32x128xf32, #tpu.memory_space<vmem>>, vector<32x128xf32>
    %cst_23 = arith.constant dense<0.000000e+00> : vector<16x128xf32>
    %43 = tpu.matmul %36, %42, %cst_23 {dimension_numbers = #tpu.dot_dimension_numbers<[1], [0], [0], [1], [0, 0, 1, 1], [], []>} : vector<16x32xf32>, vector<32x128xf32>, vector<16x128xf32> -> vector<16x128xf32>
    %c0_24 = arith.constant 0 : index
    %c0_25 = arith.constant 0 : index
    %44 = vector.load %arg8[%c0_24, %c0_25] : memref<1x128xf32, #tpu.memory_space<vmem>>, vector<1x128xf32>
    %45 = vector.broadcast %44 : vector<1x128xf32> to vector<16x128xf32>
    %46 = arith.addf %43, %45 : vector<16x128xf32>
    %c0_26 = arith.constant 0 : index
    %c0_27 = arith.constant 0 : index
    %47 = vector.load %arg9[%c0_26, %c0_27] : memref<16x128xf32, #tpu.memory_space<vmem>>, vector<16x128xf32>
    tpu.vector_store %arg9[%c0_26, %c0_27], %41 {strides = array<i32>} : memref<16x128xf32, #tpu.memory_space<vmem>>, vector<16x128xf32>,
    %c0_28 = arith.constant 0 : index
    %c0_29 = arith.constant 0 : index
    %48 = vector.load %arg10[%c0_28, %c0_29] : memref<16x128xf32, #tpu.memory_space<vmem>>, vector<16x128xf32>
    tpu.vector_store %arg10[%c0_28, %c0_29], %46 {strides = array<i32>} : memref<16x128xf32, #tpu.memory_space<vmem>>, vector<16x128xf32>,
    return
  }
  func.func @transform_0(%arg0: i32) -> (i32, i32) {
    %c0_i32 = arith.constant 0 : i32
    %c0_i32_0 = arith.constant 0 : i32
    return %arg0, %c0_i32 : i32, i32
  }
  func.func @transform_1(%arg0: i32) -> (i32, i32) {
    %c0_i32 = arith.constant 0 : i32
    %c0_i32_0 = arith.constant 0 : i32
    %c0_i32_1 = arith.constant 0 : i32
    return %c0_i32, %c0_i32_0 : i32, i32
  }
  func.func @transform_2(%arg0: i32) -> (i32, i32) {
    %c0_i32 = arith.constant 0 : i32
    %c0_i32_0 = arith.constant 0 : i32
    %c0_i32_1 = arith.constant 0 : i32
    return %c0_i32, %c0_i32_0 : i32, i32
  }
  func.func @transform_3(%arg0: i32) -> (i32, i32) {
    %c0_i32 = arith.constant 0 : i32
    %c0_i32_0 = arith.constant 0 : i32
    %c0_i32_1 = arith.constant 0 : i32
    return %c0_i32, %c0_i32_0 : i32, i32
  }
  func.func @transform_4(%arg0: i32) -> (i32, i32) {
    %c0_i32 = arith.constant 0 : i32
    %c0_i32_0 = arith.constant 0 : i32
    %c0_i32_1 = arith.constant 0 : i32
    return %c0_i32, %c0_i32_0 : i32, i32
  }
  func.func @transform_5(%arg0: i32) -> (i32, i32) {
    %c0_i32 = arith.constant 0 : i32
    %c0_i32_0 = arith.constant 0 : i32
    %c0_i32_1 = arith.constant 0 : i32
    return %c0_i32, %c0_i32_0 : i32, i32
  }
  func.func @transform_6(%arg0: i32) -> (i32, i32) {
    %c0_i32 = arith.constant 0 : i32
    %c0_i32_0 = arith.constant 0 : i32
    %c0_i32_1 = arith.constant 0 : i32
    return %c0_i32, %c0_i32_0 : i32, i32
  }
  func.func @transform_7(%arg0: i32) -> (i32, i32) {
    %c0_i32 = arith.constant 0 : i32
    %c0_i32_0 = arith.constant 0 : i32
    %c0_i32_1 = arith.constant 0 : i32
    return %c0_i32, %c0_i32_0 : i32, i32
  }
  func.func @transform_8(%arg0: i32) -> (i32, i32) {
    %c0_i32 = arith.constant 0 : i32
    %c0_i32_0 = arith.constant 0 : i32
    return %arg0, %c0_i32 : i32, i32
  }
  func.func @transform_9(%arg0: i32) -> (i32, i32) {
    %c0_i32 = arith.constant 0 : i32
    %c0_i32_0 = arith.constant 0 : i32
    return %arg0, %c0_i32 : i32, i32
  }
}

</mosaic_0001>

<llo_original>
// kernel: tpu_custom_call.1
$region0: #{tpu_custom_call.1}
  #allocation0 [shape = 'u32[]', space=smem, size = 0x4, offset = 0x4, fixed_abs, tag = 'smem constant byte address 0x4 - core index']
  #allocation1 [shape = 'u32[144,128]{1,0:T(1,128)}', space=vmem, size = 0x12000, scoped, tag = 'internal scratch']
  %s0 = inlined_call_operand.hbm [shape: f32[16,32], index: 0, kind: input, shape index: {}]
  %s1 = inlined_call_operand.hbm [shape: f32[32,32], index: 1, kind: input, shape index: {}]
  %s2 = inlined_call_operand.vmem [shape: f32[1,32], index: 2, kind: input, shape index: {}]
  %s3 = inlined_call_operand.vmem [shape: f32[1,32], index: 3, kind: input, shape index: {}]
  %s4 = inlined_call_operand.hbm [shape: f32[32,128], index: 4, kind: input, shape index: {}]
  %s5 = inlined_call_operand.hbm [shape: f32[32,128], index: 5, kind: input, shape index: {}]
  %s6 = inlined_call_operand.vmem [shape: f32[1,128], index: 6, kind: input, shape index: {}]
  %s7 = inlined_call_operand.vmem [shape: f32[1,128], index: 7, kind: input, shape index: {}]
  %s8 = inlined_call_operand.hbm [shape: f32[16,128], index: 8, kind: output, shape index: {0}]
  %s9 = inlined_call_operand.hbm [shape: f32[16,128], index: 9, kind: output, shape index: {1}]
  %10 = xla_tuple %s8, %s9
  %s11 = sld [smem:[#allocation0]]
  $region66: #{tpu_custom_call.1} parent=0
    _
  %s13 = ssub.s32 1, %s11
  %s14 = scalar_select 0, %s13, %s11
  $region1: #{tpu_custom_call.1} parent=0
    #allocation2 [shape = 'u8[8192]{0}', space=vmem, size = 0x2000, scoped, tag = 'input window, operand 0, single buffered']
    #allocation3 [shape = 's32[1]{0}', space=sflag, size = 0x4, scoped, tag = 'scoped memory for tpu_custom_call.1']
    #allocation4 [shape = 's32[1]{0}', space=sflag, size = 0x4, scoped, tag = 'scoped memory for tpu_custom_call.1']
    #allocation5 [shape = 'u8[16384]{0}', space=vmem, size = 0x4000, scoped, tag = 'input window, operand 1, single buffered']
    #allocation6 [shape = 's32[1]{0}', space=sflag, size = 0x4, scoped, tag = 'scoped memory for tpu_custom_call.1']
    #allocation7 [shape = 'u8[16384]{0}', space=vmem, size = 0x4000, scoped, tag = 'input window, operand 4, single buffered']
    #allocation8 [shape = 'u8[16384]{0}', space=vmem, size = 0x4000, scoped, tag = 'input window, operand 5, single buffered']
    #allocation9 [shape = 's32[1]{0}', space=sflag, size = 0x4, scoped, tag = 'scoped memory for tpu_custom_call.1']
    #allocation10 [shape = 'u8[8192]{0}', space=vmem, size = 0x2000, scoped, tag = 'output window, operand 0, single buffered']
    #allocation11 [shape = 'u8[8192]{0}', space=vmem, size = 0x2000, scoped, tag = 'output window, operand 1, single buffered']
    #allocation12 [shape = 's32[1]{0}', space=sflag, size = 0x4, scoped, tag = 'scoped memory for tpu_custom_call.1']
    %15 = vsyncpa [#allocation3], 0
    %16 = vsyncpa [#allocation6], 0
    %17 = vsyncpa [#allocation9], 0
    %18 = vsyncpa [#allocation4], 0
    %19 = vsyncpa [#allocation12], 0
    // Predicated region
    $region2: #{tpu_custom_call.1} parent=1 // pred_check
      _
    $region3: #{tpu_custom_call.1} parent=1 // pred_check_branch
      %21 = sbr.rel (0) target = $region5
    $region4: #{tpu_custom_call.1} parent=1 // pred_region
      %s23 = ssub.s32 256, 256
      %24 = vsyncadd [#allocation3], %s23
      %s25 = sshll.u32 [#allocation2], 4
      %s26 = int_to_ptr.vmem [resolvable:$true] %s25
      %31 = dma.hbm_to_vmem [thread:$0]  %s0, 256, %s26, [#allocation3], 128, 128, 8
    $region5: #{tpu_custom_call.1} parent=1 // pred_fallthru
      _
    // Predicated region
    $region6: #{tpu_custom_call.1} parent=1 // pred_check
      _
    $region7: #{tpu_custom_call.1} parent=1 // pred_check_branch
      %33 = sbr.rel (0) target = $region9
    $region8: #{tpu_custom_call.1} parent=1 // pred_region
      %s35 = ssub.s32 512, 512
      %36 = vsyncadd [#allocation6], %s35
      %s37 = sshll.u32 [#allocation5], 4
      %s38 = int_to_ptr.vmem [resolvable:$true] %s37
      %43 = dma.hbm_to_vmem [thread:$0]  %s1, 512, %s38, [#allocation6], 128, 128, 8
    $region9: #{tpu_custom_call.1} parent=1 // pred_fallthru
      _
    // Predicated region
    $region10: #{tpu_custom_call.1} parent=1 // pred_check
      _
    $region11: #{tpu_custom_call.1} parent=1 // pred_check_branch
      %45 = sbr.rel (0) target = $region13
    $region12: #{tpu_custom_call.1} parent=1 // pred_region
      _
    $region13: #{tpu_custom_call.1} parent=1 // pred_fallthru
      _
    // Predicated region
    $region14: #{tpu_custom_call.1} parent=1 // pred_check
      _
    $region15: #{tpu_custom_call.1} parent=1 // pred_check_branch
      %47 = sbr.rel (0) target = $region17
    $region16: #{tpu_custom_call.1} parent=1 // pred_region
      _
    $region17: #{tpu_custom_call.1} parent=1 // pred_fallthru
      _
    // Predicated region
    $region18: #{tpu_custom_call.1} parent=1 // pred_check
      _
    $region19: #{tpu_custom_call.1} parent=1 // pred_check_branch
      %49 = sbr.rel (0) target = $region21
    $region20: #{tpu_custom_call.1} parent=1 // pred_region
      %s51 = ssub.s32 512, 512
      %52 = vsyncadd [#allocation6], %s51
      %s53 = sshll.u32 [#allocation7], 4
      %s54 = int_to_ptr.vmem [resolvable:$true] %s53
      %59 = dma.hbm_to_vmem [thread:$0]  %s4, 512, %s54, [#allocation6], 128, 128, 8
    $region21: #{tpu_custom_call.1} parent=1 // pred_fallthru
      _
    // Predicated region
    $region22: #{tpu_custom_call.1} parent=1 // pred_check
      _
    $region23: #{tpu_custom_call.1} parent=1 // pred_check_branch
      %61 = sbr.rel (0) target = $region25
    $region24: #{tpu_custom_call.1} parent=1 // pred_region
      %s63 = ssub.s32 512, 512
      %64 = vsyncadd [#allocation9], %s63
      %s65 = sshll.u32 [#allocation8], 4
      %s66 = int_to_ptr.vmem [resolvable:$true] %s65
      %71 = dma.hbm_to_vmem [thread:$0]  %s5, 512, %s66, [#allocation9], 128, 128, 8
    $region25: #{tpu_custom_call.1} parent=1 // pred_fallthru
      _
    // Predicated region
    $region26: #{tpu_custom_call.1} parent=1 // pred_check
      _
    $region27: #{tpu_custom_call.1} parent=1 // pred_check_branch
      %73 = sbr.rel (0) target = $region29
    $region28: #{tpu_custom_call.1} parent=1 // pred_region
      _
    $region29: #{tpu_custom_call.1} parent=1 // pred_fallthru
      _
    // Predicated region
    $region30: #{tpu_custom_call.1} parent=1 // pred_check
      _
    $region31: #{tpu_custom_call.1} parent=1 // pred_check_branch
      %75 = sbr.rel (0) target = $region33
    $region32: #{tpu_custom_call.1} parent=1 // pred_region
      _
    $region33: #{tpu_custom_call.1} parent=1 // pred_fallthru
      _
    // Predicated region
    $region34: #{tpu_custom_call.1} parent=1 // pred_check
      _
    $region35: #{tpu_custom_call.1} parent=1 // pred_check_branch
      %77 = sbr.rel (0) target = $region37
    $region36: #{tpu_custom_call.1} parent=1 // pred_region
      %78 = dma.done [#allocation3], 256
    $region37: #{tpu_custom_call.1} parent=1 // pred_fallthru
      _
    // Predicated region
    $region38: #{tpu_custom_call.1} parent=1 // pred_check
      _
    $region39: #{tpu_custom_call.1} parent=1 // pred_check_branch
      %80 = sbr.rel (0) target = $region41
    $region40: #{tpu_custom_call.1} parent=1 // pred_region
      %81 = dma.done [#allocation6], 512
    $region41: #{tpu_custom_call.1} parent=1 // pred_fallthru
      _
    // Predicated region
    $region42: #{tpu_custom_call.1} parent=1 // pred_check
      _
    $region43: #{tpu_custom_call.1} parent=1 // pred_check_branch
      %83 = sbr.rel (0) target = $region45
    $region44: #{tpu_custom_call.1} parent=1 // pred_region
      %84 = dma.done [#allocation6], 512
    $region45: #{tpu_custom_call.1} parent=1 // pred_fallthru
      _
    // Predicated region
    $region46: #{tpu_custom_call.1} parent=1 // pred_check
      _
    $region47: #{tpu_custom_call.1} parent=1 // pred_check_branch
      %86 = sbr.rel (0) target = $region49
    $region48: #{tpu_custom_call.1} parent=1 // pred_region
      %87 = dma.done [#allocation9], 512
    $region49: #{tpu_custom_call.1} parent=1 // pred_fallthru
      _
    %v88 = vld [vmem:[#allocation2] sm:$0xff]
    %v89 = vld [vmem:[#allocation2 + $0x8] sm:$0xff]
    %v90 = vld [vmem:[#allocation5] sm:$0xff]
    %v91 = vld [vmem:[#allocation5 + $0x8] sm:$0xff]
    %v92 = vld [vmem:[#allocation5 + $0x10] sm:$0xff]
    %v93 = vld [vmem:[#allocation5 + $0x18] sm:$0xff]
    %vm94 = vcmask 261120
    %v96 = vsel %vm94, %v88, 0
    %v99 = vsel %vm94, %v89, 0
    %101 = vmatprep.subr.mxu0 0.0
    %102 = vmatpush1.msra.mxu0 0.0
    %103 = vmatprep.subr.mxu0 0.0
    %104 = vmatpush1.msra.mxu0 0.0
    %105 = vmatprep.subr.mxu0 0.0
    %106 = vmatpush1.msra.mxu0 0.0
    %107 = vmatprep.subr.mxu0 0.0
    %108 = vmatpush1.msra.mxu0 0.0
    %109 = vmatprep.subr.mxu0 0.0
    %110 = vmatpush1.msra.mxu0 0.0
    %111 = vmatprep.subr.mxu0 0.0
    %112 = vmatpush1.msra.mxu0 0.0
    %113 = vmatprep.subr.mxu0 0.0
    %114 = vmatpush1.msra.mxu0 0.0
    %115 = vmatprep.subr.mxu0 0.0
    %116 = vmatpush1.msra.mxu0 0.0
    %117 = vmatprep.subr.mxu0 0.0
    %118 = vmatpush1.msra.mxu0 0.0
    %119 = vmatprep.subr.mxu0 0.0
    %120 = vmatpush1.msra.mxu0 0.0
    %121 = vmatprep.subr.mxu0 0.0
    %122 = vmatpush1.msra.mxu0 0.0
    %123 = vmatprep.subr.mxu0 0.0
    %124 = vmatpush1.msra.mxu0 0.0
    %125 = vmatprep.subr.mxu0 0.0
    %126 = vmatpush1.msra.mxu0 %v93
    %127 = vmatprep.subr.mxu0 0.0
    %128 = vmatpush1.msra.mxu0 %v92
    %129 = vmatprep.subr.mxu0 0.0
    %130 = vmatpush1.msra.mxu0 %v91
    %131 = vmatprep.subr.mxu0 0.0
    %132 = vmatpush1.msra.mxu0 %v90
    %133 = vmatprep.subr.mxu0 0.0
    %134 = vmatpush2.msra.mxu0 0.0
    %135 = vmatprep.subr.mxu0 0.0
    %136 = vmatpush2.msra.mxu0 0.0
    %137 = vmatprep.subr.mxu0 0.0
    %138 = vmatpush2.msra.mxu0 0.0
    %139 = vmatprep.subr.mxu0 0.0
    %140 = vmatpush2.msra.mxu0 0.0
    %141 = vmatprep.subr.mxu0 0.0
    %142 = vmatpush2.msra.mxu0 0.0
    %143 = vmatprep.subr.mxu0 0.0
    %144 = vmatpush2.msra.mxu0 0.0
    %145 = vmatprep.subr.mxu0 0.0
    %146 = vmatpush2.msra.mxu0 0.0
    %147 = vmatprep.subr.mxu0 0.0
    %148 = vmatpush2.msra.mxu0 0.0
    %149 = vmatprep.subr.mxu0 0.0
    %150 = vmatpush2.msra.mxu0 0.0
    %151 = vmatprep.subr.mxu0 0.0
    %152 = vmatpush2.msra.mxu0 0.0
    %153 = vmatprep.subr.mxu0 0.0
    %154 = vmatpush2.msra.mxu0 0.0
    %155 = vmatprep.subr.mxu0 0.0
    %156 = vmatpush2.msra.mxu0 0.0
    %157 = vmatprep.subr.mxu0 0.0
    %158 = vmatpush2.msra.mxu0 0.0
    %159 = vmatprep.subr.mxu0 0.0
    %160 = vmatpush2.msra.mxu0 0.0
    %161 = vmatprep.subr.mxu0 0.0
    %162 = vmatpush2.msra.mxu0 0.0
    %163 = vmatprep.subr.mxu0 0.0
    %164 = vmatpush2.msra.mxu0 0.0
    %165 = vmatprep.mubr.f32.mxu0 0.0
    %166 = vmatmul.mubr.f32.gmra.mxu0 %v96
    %v167 = vpop.f32.mrf.mxu0
    %v168 = vadd.f32 0.0, %v167
    %v169 = vpop.f32.mrf.mxu0
    %170 = vmatprep.mubr.f32.mxu0 0.0
    %171 = vmatmul.mubr.f32.gmra.mxu0 %v99
    %v172 = vpop.f32.mrf.mxu0
    %v173 = vadd.f32 0.0, %v172
    %v174 = vpop.f32.mrf.mxu0
    %175 = vdwg.mxu0
    %v176 = vmul.f32 %v168, 0.5
    %v177 = vmul.f32 %v173, 0.5
    %v178 = vmul.f32 %v168, 0.70710677
    %v179 = vmul.f32 %v173, 0.70710677
    %v180 = verf.f32.pop %v178
    %v181 = verf.f32.pop %v179
    %v182 = vadd.f32 %v180, 1.0
    %v183 = vadd.f32 %v181, 1.0
    %v184 = vmul.f32 %v176, %v182
    %v185 = vmul.f32 %v177, %v183
    %v186 = vld [vmem:[%s2] sm:$0x1]
    %v187 = vld [vmem:[%s3] sm:$0x1]
    %v188 = vsel %vm94, %v184, 0.0
    %189 = vadd.xlane.f32.xlu0 %v188
    %v190 = vpop.xlane.xlu0 %189
    %v191 = vsel %vm94, %v185, 0.0
    %192 = vadd.xlane.f32.xlu0 %v191
    %v193 = vpop.xlane.xlu0 %192
    %v194 = vrcp.pop 32.0
    %v195 = vmul.f32 %v190, %v194
    %v196 = vmul.f32 %v193, %v194
    %v197 = vsub.f32 %v184, %v195
    %v198 = vsub.f32 %v185, %v196
    %v199 = vmul.f32 %v197, %v197
    %v200 = vmul.f32 %v198, %v198
    %v201 = vsel %vm94, %v199, 0.0
    %202 = vadd.xlane.f32.xlu0 %v201
    %v203 = vpop.xlane.xlu0 %202
    %v204 = vsel %vm94, %v200, 0.0
    %205 = vadd.xlane.f32.xlu0 %v204
    %v206 = vpop.xlane.xlu0 %205
    %v207 = vmul.f32 %v203, %v194
    %v208 = vmul.f32 %v206, %v194
    %v209 = vadd.f32 %v207, 1e-05
    %v210 = vadd.f32 %v208, 1e-05
    %v211 = vrsqrt.pop %v209
    %v212 = vrsqrt.pop %v210
    %v213 = vmul.f32 %v197, %v211
    %v214 = vmul.f32 %v198, %v212
    %v216 = vlaneseq
    %v217 = vshrl.u32 %v216, 7
    %v218 = vsub.s32 0, %v217
    %v219 = vrot.slane %v186, %v218
    %v221 = vmul.f32 %v213, %v219
    %v222 = vmul.f32 %v214, %v219
    %v224 = vlaneseq
    %v225 = vshrl.u32 %v224, 7
    %v226 = vsub.s32 0, %v225
    %v227 = vrot.slane %v187, %v226
    %v229 = vadd.f32 %v221, %v227
    %v230 = vadd.f32 %v222, %v227
    %v231 = vld [vmem:[#allocation7] sm:$0xff]
    %v232 = vld [vmem:[#allocation7 + $0x8] sm:$0xff]
    %v233 = vld [vmem:[#allocation7 + $0x10] sm:$0xff]
    %v234 = vld [vmem:[#allocation7 + $0x18] sm:$0xff]
    %v235 = vld [vmem:[%s6] sm:$0x1]
    %v237 = vlaneseq
    %v238 = vshrl.u32 %v237, 7
    %v239 = vsub.s32 0, %v238
    %v240 = vrot.slane %v235, %v239
    %v243 = vsel %vm94, %v229, 0
    %v246 = vsel %vm94, %v230, 0
    %248 = vmatprep.subr.mxu0 0.0
    %249 = vmatpush1.msra.mxu0 0.0
    %250 = vmatprep.subr.mxu0 0.0
    %251 = vmatpush1.msra.mxu0 0.0
    %252 = vmatprep.subr.mxu0 0.0
    %253 = vmatpush1.msra.mxu0 0.0
    %254 = vmatprep.subr.mxu0 0.0
    %255 = vmatpush1.msra.mxu0 0.0
    %256 = vmatprep.subr.mxu0 0.0
    %257 = vmatpush1.msra.mxu0 0.0
    %258 = vmatprep.subr.mxu0 0.0
    %259 = vmatpush1.msra.mxu0 0.0
    %260 = vmatprep.subr.mxu0 0.0
    %261 = vmatpush1.msra.mxu0 0.0
    %262 = vmatprep.subr.mxu0 0.0
    %263 = vmatpush1.msra.mxu0 0.0
    %264 = vmatprep.subr.mxu0 0.0
    %265 = vmatpush1.msra.mxu0 0.0
    %266 = vmatprep.subr.mxu0 0.0
    %267 = vmatpush1.msra.mxu0 0.0
    %268 = vmatprep.subr.mxu0 0.0
    %269 = vmatpush1.msra.mxu0 0.0
    %270 = vmatprep.subr.mxu0 0.0
    %271 = vmatpush1.msra.mxu0 0.0
    %272 = vmatprep.subr.mxu0 0.0
    %273 = vmatpush1.msra.mxu0 %v234
    %274 = vmatprep.subr.mxu0 0.0
    %275 = vmatpush1.msra.mxu0 %v233
    %276 = vmatprep.subr.mxu0 0.0
    %277 = vmatpush1.msra.mxu0 %v232
    %278 = vmatprep.subr.mxu0 0.0
    %279 = vmatpush1.msra.mxu0 %v231
    %280 = vmatprep.subr.mxu0 0.0
    %281 = vmatpush2.msra.mxu0 0.0
    %282 = vmatprep.subr.mxu0 0.0
    %283 = vmatpush2.msra.mxu0 0.0
    %284 = vmatprep.subr.mxu0 0.0
    %285 = vmatpush2.msra.mxu0 0.0
    %286 = vmatprep.subr.mxu0 0.0
    %287 = vmatpush2.msra.mxu0 0.0
    %288 = vmatprep.subr.mxu0 0.0
    %289 = vmatpush2.msra.mxu0 0.0
    %290 = vmatprep.subr.mxu0 0.0
    %291 = vmatpush2.msra.mxu0 0.0
    %292 = vmatprep.subr.mxu0 0.0
    %293 = vmatpush2.msra.mxu0 0.0
    %294 = vmatprep.subr.mxu0 0.0
    %295 = vmatpush2.msra.mxu0 0.0
    %296 = vmatprep.subr.mxu0 0.0
    %297 = vmatpush2.msra.mxu0 0.0
    %298 = vmatprep.subr.mxu0 0.0
    %299 = vmatpush2.msra.mxu0 0.0
    %300 = vmatprep.subr.mxu0 0.0
    %301 = vmatpush2.msra.mxu0 0.0
    %302 = vmatprep.subr.mxu0 0.0
    %303 = vmatpush2.msra.mxu0 0.0
    %304 = vmatprep.subr.mxu0 0.0
    %305 = vmatpush2.msra.mxu0 0.0
    %306 = vmatprep.subr.mxu0 0.0
    %307 = vmatpush2.msra.mxu0 0.0
    %308 = vmatprep.subr.mxu0 0.0
    %309 = vmatpush2.msra.mxu0 0.0
    %310 = vmatprep.subr.mxu0 0.0
    %311 = vmatpush2.msra.mxu0 0.0
    %312 = vmatprep.mubr.f32.mxu0 0.0
    %313 = vmatmul.mubr.f32.gmra.mxu0 %v243
    %v314 = vpop.f32.mrf.mxu0
    %v315 = vadd.f32 %v240, %v314
    %v316 = vpop.f32.mrf.mxu0
    %317 = vmatprep.mubr.f32.mxu0 0.0
    %318 = vmatmul.mubr.f32.gmra.mxu0 %v246
    %v319 = vpop.f32.mrf.mxu0
    %v320 = vadd.f32 %v240, %v319
    %v321 = vpop.f32.mrf.mxu0
    %322 = vdwg.mxu0
    %v323 = vld [vmem:[#allocation8] sm:$0xff]
    %v324 = vld [vmem:[#allocation8 + $0x8] sm:$0xff]
    %v325 = vld [vmem:[#allocation8 + $0x10] sm:$0xff]
    %v326 = vld [vmem:[#allocation8 + $0x18] sm:$0xff]
    %v327 = vld [vmem:[%s7] sm:$0x1]
    %v329 = vlaneseq
    %v330 = vshrl.u32 %v329, 7
    %v331 = vsub.s32 0, %v330
    %v332 = vrot.slane %v327, %v331
    %334 = vmatprep.subr.mxu0 0.0
    %335 = vmatpush1.msra.mxu0 0.0
    %336 = vmatprep.subr.mxu0 0.0
    %337 = vmatpush1.msra.mxu0 0.0
    %338 = vmatprep.subr.mxu0 0.0
    %339 = vmatpush1.msra.mxu0 0.0
    %340 = vmatprep.subr.mxu0 0.0
    %341 = vmatpush1.msra.mxu0 0.0
    %342 = vmatprep.subr.mxu0 0.0
    %343 = vmatpush1.msra.mxu0 0.0
    %344 = vmatprep.subr.mxu0 0.0
    %345 = vmatpush1.msra.mxu0 0.0
    %346 = vmatprep.subr.mxu0 0.0
    %347 = vmatpush1.msra.mxu0 0.0
    %348 = vmatprep.subr.mxu0 0.0
    %349 = vmatpush1.msra.mxu0 0.0
    %350 = vmatprep.subr.mxu0 0.0
    %351 = vmatpush1.msra.mxu0 0.0
    %352 = vmatprep.subr.mxu0 0.0
    %353 = vmatpush1.msra.mxu0 0.0
    %354 = vmatprep.subr.mxu0 0.0
    %355 = vmatpush1.msra.mxu0 0.0
    %356 = vmatprep.subr.mxu0 0.0
    %357 = vmatpush1.msra.mxu0 0.0
    %358 = vmatprep.subr.mxu0 0.0
    %359 = vmatpush1.msra.mxu0 %v326
    %360 = vmatprep.subr.mxu0 0.0
    %361 = vmatpush1.msra.mxu0 %v325
    %362 = vmatprep.subr.mxu0 0.0
    %363 = vmatpush1.msra.mxu0 %v324
    %364 = vmatprep.subr.mxu0 0.0
    %365 = vmatpush1.msra.mxu0 %v323
    %366 = vmatprep.subr.mxu0 0.0
    %367 = vmatpush2.msra.mxu0 0.0
    %368 = vmatprep.subr.mxu0 0.0
    %369 = vmatpush2.msra.mxu0 0.0
    %370 = vmatprep.subr.mxu0 0.0
    %371 = vmatpush2.msra.mxu0 0.0
    %372 = vmatprep.subr.mxu0 0.0
    %373 = vmatpush2.msra.mxu0 0.0
    %374 = vmatprep.subr.mxu0 0.0
    %375 = vmatpush2.msra.mxu0 0.0
    %376 = vmatprep.subr.mxu0 0.0
    %377 = vmatpush2.msra.mxu0 0.0
    %378 = vmatprep.subr.mxu0 0.0
    %379 = vmatpush2.msra.mxu0 0.0
    %380 = vmatprep.subr.mxu0 0.0
    %381 = vmatpush2.msra.mxu0 0.0
    %382 = vmatprep.subr.mxu0 0.0
    %383 = vmatpush2.msra.mxu0 0.0
    %384 = vmatprep.subr.mxu0 0.0
    %385 = vmatpush2.msra.mxu0 0.0
    %386 = vmatprep.subr.mxu0 0.0
    %387 = vmatpush2.msra.mxu0 0.0
    %388 = vmatprep.subr.mxu0 0.0
    %389 = vmatpush2.msra.mxu0 0.0
    %390 = vmatprep.subr.mxu0 0.0
    %391 = vmatpush2.msra.mxu0 0.0
    %392 = vmatprep.subr.mxu0 0.0
    %393 = vmatpush2.msra.mxu0 0.0
    %394 = vmatprep.subr.mxu0 0.0
    %395 = vmatpush2.msra.mxu0 0.0
    %396 = vmatprep.subr.mxu0 0.0
    %397 = vmatpush2.msra.mxu0 0.0
    %398 = vmatprep.mubr.f32.mxu0 0.0
    %399 = vmatmul.mubr.f32.gmra.mxu0 %v243
    %v400 = vpop.f32.mrf.mxu0
    %v401 = vadd.f32 %v332, %v400
    %v402 = vpop.f32.mrf.mxu0
    %403 = vmatprep.mubr.f32.mxu0 0.0
    %404 = vmatmul.mubr.f32.gmra.mxu0 %v246
    %v405 = vpop.f32.mrf.mxu0
    %v406 = vadd.f32 %v332, %v405
    %v407 = vpop.f32.mrf.mxu0
    %408 = vdwg.mxu0
    %409 = vst [vmem:[#allocation10] sm:$0xff] %v315
    %410 = vst [vmem:[#allocation10 + $0x8] sm:$0xff] %v320
    %411 = vst [vmem:[#allocation11] sm:$0xff] %v401
    %412 = vst [vmem:[#allocation11 + $0x8] sm:$0xff] %v406
    // Predicated region
    $region50: #{tpu_custom_call.1} parent=1 // pred_check
      _
    $region51: #{tpu_custom_call.1} parent=1 // pred_check_branch
      %414 = sbr.rel (0) target = $region53
    $region52: #{tpu_custom_call.1} parent=1 // pred_region
      %s416 = ssub.s32 256, 256
      %417 = vsyncadd [#allocation4], %s416
      %s418 = sshll.u32 [#allocation10], 4
      %s419 = int_to_ptr.vmem [resolvable:$true] %s418
      %424 = dma.vmem_to_hbm [thread:$0]  %s419, 256, %s8, [#allocation4], 128, 128, 8
    $region53: #{tpu_custom_call.1} parent=1 // pred_fallthru
      _
    // Predicated region
    $region54: #{tpu_custom_call.1} parent=1 // pred_check
      _
    $region55: #{tpu_custom_call.1} parent=1 // pred_check_branch
      %426 = sbr.rel (0) target = $region57
    $region56: #{tpu_custom_call.1} parent=1 // pred_region
      %s428 = ssub.s32 256, 256
      %429 = vsyncadd [#allocation12], %s428
      %s430 = sshll.u32 [#allocation11], 4
      %s431 = int_to_ptr.vmem [resolvable:$true] %s430
      %436 = dma.vmem_to_hbm [thread:$0]  %s431, 256, %s9, [#allocation12], 128, 128, 8
    $region57: #{tpu_custom_call.1} parent=1 // pred_fallthru
      _
    // Predicated region
    $region58: #{tpu_custom_call.1} parent=1 // pred_check
      _
    $region59: #{tpu_custom_call.1} parent=1 // pred_check_branch
      %438 = sbr.rel (0) target = $region61
    $region60: #{tpu_custom_call.1} parent=1 // pred_region
      %439 = dma.done [#allocation4], 256
    $region61: #{tpu_custom_call.1} parent=1 // pred_fallthru
      _
    // Predicated region
    $region62: #{tpu_custom_call.1} parent=1 // pred_check
      _
    $region63: #{tpu_custom_call.1} parent=1 // pred_check_branch
      %441 = sbr.rel (0) target = $region65
    $region64: #{tpu_custom_call.1} parent=1 // pred_region
      %442 = dma.done [#allocation12], 256
    $region65: #{tpu_custom_call.1} parent=1 // pred_fallthru
      _
    %443 = vsyncpa [#allocation3], 1
    %444 = vsyncpa [#allocation6], 1
    %445 = vsyncpa [#allocation9], 1
    %446 = vsyncpa [#allocation4], 1
    %447 = vsyncpa [#allocation12], 1

</llo_original>
